<compile_context>
chip_gen: v6e
topology: v6e:2x2x1
jax: 0.10.0
libtpu: 0.0.40
codegen_flags: <defaults>
</compile_context>

<pallas_src>
import jax
import jax.numpy as jnp
from jax import lax
from jax.experimental import pallas as pl
from jax.experimental.pallas import tpu as pltpu

IN_FEATURES = 4
HIDDEN = 20
OUT_FEATURES = 3

# MXU/tile-friendly padded parameter shapes (zero-padded; results unchanged).
IN_PAD = 8
HID_PAD = 24
OUT_PAD = 8

# Max lanes (samples) per grid step. Multiple of 128.
DEFAULT_MAX_BLOCK_B = 32768


def _cdiv(a, b):
    return -(-a // b)


def _round_up(a, m):
    return _cdiv(a, m) * m


def _mlp_kernel(w1_ref, b1_ref, w2_ref, b2_ref, x_ref, out_ref):
    """One batch tile, feature-major: x_ref (IN_PAD, TB) -> out_ref (3, TB)."""
    x = x_ref[...]                                    # (IN_PAD, TB), caller dtype

    # Layer 1 on the MXU: (HID_PAD, IN_PAD) @ (IN_PAD, TB) -> (HID_PAD, TB) f32.
    h = jnp.dot(w1_ref[...], x,
                preferred_element_type=jnp.float32,
                precision=lax.Precision.HIGHEST)
    h = jnp.maximum(h + b1_ref[...], 0.0)             # bias + ReLU (VPU)

    # Layer 2 on the MXU: (OUT_PAD, HID_PAD) @ (HID_PAD, TB) -> (OUT_PAD, TB) f32.
    y = jnp.dot(w2_ref[...], h.astype(w2_ref.dtype),
                preferred_element_type=jnp.float32,
                precision=lax.Precision.HIGHEST)
    y = y + b2_ref[...]

    # Only the 3 real output rows are stored (lane-dense stores, sublane-masked).
    out_ref[...] = y[:OUT_FEATURES, :].astype(out_ref.dtype)


def ann_one_hid_forward_feature_major(x_fm, w1, b1, w2, b2, *,
                                      max_block_b=DEFAULT_MAX_BLOCK_B):
    """Feature-major forward: x_fm (4, B) -> (3, B).

    Callers that keep activations feature-major end-to-end avoid the HBM
    transpose relayouts done by `ann_one_hid_forward` entirely.
    w1: (20, 4); b1: (20,); w2: (3, 20); b2: (3,)  (PyTorch layouts).
    """
    assert x_fm.shape[0] == IN_FEATURES
    B = int(x_fm.shape[1])
    out_dtype = x_fm.dtype
    # bf16 activations go straight into the MXU; everything else computes in f32.
    compute_dtype = (jnp.bfloat16 if x_fm.dtype == jnp.dtype(jnp.bfloat16)
                     else jnp.float32)

    # Zero-pad the contraction dim 4 -> 8 once (single copy, fuses under jit).
    x_p = jnp.pad(x_fm.astype(compute_dtype),
                  ((0, IN_PAD - IN_FEATURES), (0, 0)))          # (IN_PAD, B)

    # Zero-padded parameters (padded rows/cols are exactly zero).
    w1p = jnp.zeros((HID_PAD, IN_PAD), compute_dtype)
    w1p = w1p.at[:HIDDEN, :IN_FEATURES].set(w1.astype(compute_dtype))
    b1p = jnp.zeros((HID_PAD, 1), jnp.float32)
    b1p = b1p.at[:HIDDEN, 0].set(b1.astype(jnp.float32))
    w2p = jnp.zeros((OUT_PAD, HID_PAD), compute_dtype)
    w2p = w2p.at[:OUT_FEATURES, :HIDDEN].set(w2.astype(compute_dtype))
    b2p = jnp.zeros((OUT_PAD, 1), jnp.float32)
    b2p = b2p.at[:OUT_FEATURES, 0].set(b2.astype(jnp.float32))

    # Tile-width policy:
    #  * B < 128: a single full-array block (lane dim equals the array dim).
    #  * otherwise: lane-dense tiles (multiple of 128), sized so the tile count
    #    is even (>= 2) for v7x 2-TC sharding, capped at max_block_b; the last
    #    block may be partial (no batch over-padding).
    if B < 128:
        tb = B
    else:
        b_eff = _round_up(B, 128)
        n_target = 2 * _cdiv(b_eff, 2 * max_block_b)
        tb = min(max_block_b, _round_up(_cdiv(b_eff, n_target), 128))
    grid_b = _cdiv(B, tb)

    itemsize = jnp.dtype(compute_dtype).itemsize
    cost = pl.CostEstimate(
        flops=2 * B * (IN_PAD * HID_PAD + HID_PAD * OUT_PAD),
        transcendentals=0,
        bytes_accessed=(IN_PAD * B + OUT_FEATURES * B) * itemsize
        + (HID_PAD * IN_PAD + OUT_PAD * HID_PAD) * itemsize
        + (HID_PAD + OUT_PAD) * 4,
    )

    out_fm = pl.pallas_call(
        _mlp_kernel,
        out_shape=jax.ShapeDtypeStruct((OUT_FEATURES, B), out_dtype),
        grid_spec=pltpu.PrefetchScalarGridSpec(
            num_scalar_prefetch=0,
            grid=(grid_b,),
            in_specs=[
                # Tiny params: constant index_map -> resident in VMEM across steps.
                pl.BlockSpec((HID_PAD, IN_PAD), lambda i: (0, 0)),
                pl.BlockSpec((HID_PAD, 1), lambda i: (0, 0)),
                pl.BlockSpec((OUT_PAD, HID_PAD), lambda i: (0, 0)),
                pl.BlockSpec((OUT_PAD, 1), lambda i: (0, 0)),
                # Lane-dense, batch-tiled input; last block may be partial.
                pl.BlockSpec((IN_PAD, tb), lambda i: (0, i)),
            ],
            out_specs=pl.BlockSpec((OUT_FEATURES, tb), lambda i: (0, i)),
        ),
        compiler_params=pltpu.CompilerParams(
            dimension_semantics=("parallel",),   # shard batch tiles across TCs (v7x)
        ),
        cost_estimate=cost,
    )(w1p, b1p, w2p, b2p, x_p)

    return out_fm                                   # (3, B) feature-major


def ann_one_hid_forward(x, w1, b1, w2, b2, *, max_block_b=DEFAULT_MAX_BLOCK_B):
    """Batch-major forward matching the PyTorch module: x (B, 4) -> (B, 3).

    The two transposes below are pure HBM relayouts; pipelines that can keep
    activations feature-major should call ann_one_hid_forward_feature_major
    directly and skip them.
    """
    out_fm = ann_one_hid_forward_feature_major(
        jnp.transpose(x), w1, b1, w2, b2, max_block_b=max_block_b)
    return jnp.transpose(out_fm)


def init_params(key):
    """PyTorch nn.Linear-style init (uniform +/- 1/sqrt(fan_in)), PyTorch layouts."""
    k1, k2, k3, k4 = jax.random.split(key, 4)
    bound1 = 1.0 / (IN_FEATURES ** 0.5)
    bound2 = 1.0 / (HIDDEN ** 0.5)
    w1 = jax.random.uniform(k1, (HIDDEN, IN_FEATURES), jnp.float32, -bound1, bound1)
    b1 = jax.random.uniform(k2, (HIDDEN,), jnp.float32, -bound1, bound1)
    w2 = jax.random.uniform(k3, (OUT_FEATURES, HIDDEN), jnp.float32, -bound2, bound2)
    b2 = jax.random.uniform(k4, (OUT_FEATURES,), jnp.float32, -bound2, bound2)
    return w1, b1, w2, b2


if __name__ == "__main__":
    key = jax.random.PRNGKey(0)
    k_params, k_x1, k_x2 = jax.random.split(key, 3)
    w1, b1, w2, b2 = init_params(k_params)

    def reference(x):
        h = jnp.maximum(
            jnp.dot(x, w1.T, precision=lax.Precision.HIGHEST) + b1, 0.0)
        return jnp.dot(h, w2.T, precision=lax.Precision.HIGHEST) + b2

    fwd = jax.jit(ann_one_hid_forward)

    # Small batch (single block covering the whole array).
    B = 8
    x = jax.random.normal(k_x1, (B, IN_FEATURES), jnp.float32)
    y = fwd(x, w1, b1, w2, b2)
    jax.block_until_ready(y)
    assert y.shape == (B, OUT_FEATURES)
    assert jnp.allclose(y, reference(x), atol=1e-4, rtol=1e-4)

    # Ragged batch: exercises a 2-tile grid with a partial last block.
    B2 = 300
    x2 = jax.random.normal(k_x2, (B2, IN_FEATURES), jnp.float32)
    y2 = fwd(x2, w1, b1, w2, b2)
    jax.block_until_ready(y2)
    assert y2.shape == (B2, OUT_FEATURES)
    assert jnp.allclose(y2, reference(x2), atol=1e-4, rtol=1e-4)

    print("KERNEL_OK")
</pallas_src>

<mosaic_0001>
module attributes {stable_mosaic.version = 11 : i64} {
  func.func @_mlp_kernel(%arg0: i32, %arg1: memref<24x8xf32, #tpu.memory_space<vmem>>, %arg2: memref<24x1xf32, #tpu.memory_space<vmem>>, %arg3: memref<8x24xf32, #tpu.memory_space<vmem>>, %arg4: memref<8x1xf32, #tpu.memory_space<vmem>>, %arg5: memref<8x8xf32, #tpu.memory_space<vmem>>, %arg6: memref<3x8xf32, #tpu.memory_space<vmem>>) attributes {dimension_semantics = [#tpu.dimension_semantics<parallel>], iteration_bounds = array<i64: 1>, scalar_prefetch = 0 : i64, scratch_operands = 0 : i64, tpu.core_type = #tpu.core_type<tc>, window_params = [{pipeline_mode = #tpu.pipeline_mode<synchronous>, transform_indices = @transform_0, window_bounds = array<i64: 24, 8>}, {pipeline_mode = #tpu.pipeline_mode<synchronous>, transform_indices = @transform_1, window_bounds = array<i64: 24, 1>}, {pipeline_mode = #tpu.pipeline_mode<synchronous>, transform_indices = @transform_2, window_bounds = array<i64: 8, 24>}, {pipeline_mode = #tpu.pipeline_mode<synchronous>, transform_indices = @transform_3, window_bounds = array<i64: 8, 1>}, {transform_indices = @transform_4, window_bounds = array<i64: 8, 8>}, {transform_indices = @transform_5, window_bounds = array<i64: 3, 8>}]} {
    %c0 = arith.constant 0 : index
    %c0_0 = arith.constant 0 : index
    %0 = vector.load %arg5[%c0, %c0_0] : memref<8x8xf32, #tpu.memory_space<vmem>>, vector<8x8xf32>
    %c0_1 = arith.constant 0 : index
    %c0_2 = arith.constant 0 : index
    %1 = vector.load %arg1[%c0_1, %c0_2] : memref<24x8xf32, #tpu.memory_space<vmem>>, vector<24x8xf32>
    %cst = arith.constant dense<0.000000e+00> : vector<24x8xf32>
    %2 = tpu.matmul %1, %0, %cst {dimension_numbers = #tpu.dot_dimension_numbers<[1], [0], [0], [1], [0, 0, 1, 1], [], []>, precision = #tpu.contract_precision<fp32>} : vector<24x8xf32>, vector<8x8xf32>, vector<24x8xf32> -> vector<24x8xf32>
    %c0_3 = arith.constant 0 : index
    %c0_4 = arith.constant 0 : index
    %3 = vector.load %arg2[%c0_3, %c0_4] : memref<24x1xf32, #tpu.memory_space<vmem>>, vector<24x1xf32>
    %4 = vector.broadcast %3 : vector<24x1xf32> to vector<24x8xf32>
    %5 = arith.addf %2, %4 : vector<24x8xf32>
    %cst_5 = arith.constant 0.000000e+00 : f32
    %6 = vector.broadcast %cst_5 : f32 to vector<24x8xf32>
    %7 = arith.maximumf %5, %6 : vector<24x8xf32>
    %c0_6 = arith.constant 0 : index
    %c0_7 = arith.constant 0 : index
    %8 = vector.load %arg3[%c0_6, %c0_7] : memref<8x24xf32, #tpu.memory_space<vmem>>, vector<8x24xf32>
    %cst_8 = arith.constant dense<0.000000e+00> : vector<8x8xf32>
    %9 = tpu.matmul %8, %7, %cst_8 {dimension_numbers = #tpu.dot_dimension_numbers<[1], [0], [0], [1], [0, 0, 1, 1], [], []>, precision = #tpu.contract_precision<fp32>} : vector<8x24xf32>, vector<24x8xf32>, vector<8x8xf32> -> vector<8x8xf32>
    %c0_9 = arith.constant 0 : index
    %c0_10 = arith.constant 0 : index
    %10 = vector.load %arg4[%c0_9, %c0_10] : memref<8x1xf32, #tpu.memory_space<vmem>>, vector<8x1xf32>
    %11 = vector.broadcast %10 : vector<8x1xf32> to vector<8x8xf32>
    %12 = arith.addf %9, %11 : vector<8x8xf32>
    %13 = vector.extract_strided_slice %12 {offsets = [0, 0], sizes = [3, 8], strides = [1, 1]} : vector<8x8xf32> to vector<3x8xf32>
    %c0_11 = arith.constant 0 : index
    %c0_12 = arith.constant 0 : index
    %14 = vector.load %arg6[%c0_11, %c0_12] : memref<3x8xf32, #tpu.memory_space<vmem>>, vector<3x8xf32>
    tpu.vector_store %arg6[%c0_11, %c0_12], %13 {strides = array<i32>} : memref<3x8xf32, #tpu.memory_space<vmem>>, vector<3x8xf32>,
    return
  }
  func.func @transform_0(%arg0: i32) -> (i32, i32) {
    %c0_i32 = arith.constant 0 : i32
    %c0_i32_0 = arith.constant 0 : i32
    %c0_i32_1 = arith.constant 0 : i32
    return %c0_i32, %c0_i32_0 : i32, i32
  }
  func.func @transform_1(%arg0: i32) -> (i32, i32) {
    %c0_i32 = arith.constant 0 : i32
    %c0_i32_0 = arith.constant 0 : i32
    %c0_i32_1 = arith.constant 0 : i32
    return %c0_i32, %c0_i32_0 : i32, i32
  }
  func.func @transform_2(%arg0: i32) -> (i32, i32) {
    %c0_i32 = arith.constant 0 : i32
    %c0_i32_0 = arith.constant 0 : i32
    %c0_i32_1 = arith.constant 0 : i32
    return %c0_i32, %c0_i32_0 : i32, i32
  }
  func.func @transform_3(%arg0: i32) -> (i32, i32) {
    %c0_i32 = arith.constant 0 : i32
    %c0_i32_0 = arith.constant 0 : i32
    %c0_i32_1 = arith.constant 0 : i32
    return %c0_i32, %c0_i32_0 : i32, i32
  }
  func.func @transform_4(%arg0: i32) -> (i32, i32) {
    %c0_i32 = arith.constant 0 : i32
    %c0_i32_0 = arith.constant 0 : i32
    return %c0_i32, %arg0 : i32, i32
  }
  func.func @transform_5(%arg0: i32) -> (i32, i32) {
    %c0_i32 = arith.constant 0 : i32
    %c0_i32_0 = arith.constant 0 : i32
    return %c0_i32, %arg0 : i32, i32
  }
}

</mosaic_0001>

<llo_original>
// kernel: ann_one_hid_forward.1
$region0: #{ann_one_hid_forward.1}
  #allocation0 [shape = 'u32[]', space=smem, size = 0x4, offset = 0x4, fixed_abs, tag = 'smem constant byte address 0x4 - core index']
  #allocation1 [shape = 'u32[144,128]{1,0:T(1,128)}', space=vmem, size = 0x12000, scoped, tag = 'internal scratch']
  %s0 = inlined_call_operand.vmem [shape: f32[24,8], index: 0, kind: input, shape index: {}]
  %s1 = inlined_call_operand.vmem [shape: f32[24,1], index: 1, kind: input, shape index: {}]
  %s2 = inlined_call_operand.vmem [shape: f32[8,24], index: 2, kind: input, shape index: {}]
  %s3 = inlined_call_operand.vmem [shape: f32[8,1], index: 3, kind: input, shape index: {}]
  %s4 = inlined_call_operand.vmem [shape: f32[8,8], index: 4, kind: input, shape index: {}]
  %s5 = inlined_call_operand.hbm [shape: f32[3,8], index: 5, kind: output, shape index: {}]
  %s6 = sld [smem:[#allocation0]]
  $region30: #{ann_one_hid_forward.1} parent=0
    _
  %s8 = ssub.s32 1, %s6
  %s9 = scalar_select 0, %s8, %s6
  $region1: #{ann_one_hid_forward.1} parent=0
    #allocation2 [shape = 'u8[2048]{0}', space=vmem, size = 0x800, scoped, tag = 'output window, operand 0, single buffered']
    #allocation3 [shape = 's32[1]{0}', space=sflag, size = 0x4, scoped, tag = 'scoped memory for ann_one_hid_forward.1']
    %10 = vsyncpa [#allocation3], 0
    // Predicated region
    $region2: #{ann_one_hid_forward.1} parent=1 // pred_check
      _
    $region3: #{ann_one_hid_forward.1} parent=1 // pred_check_branch
      %12 = sbr.rel (0) target = $region5
    $region4: #{ann_one_hid_forward.1} parent=1 // pred_region
      _
    $region5: #{ann_one_hid_forward.1} parent=1 // pred_fallthru
      _
    // Predicated region
    $region6: #{ann_one_hid_forward.1} parent=1 // pred_check
      _
    $region7: #{ann_one_hid_forward.1} parent=1 // pred_check_branch
      %14 = sbr.rel (0) target = $region9
    $region8: #{ann_one_hid_forward.1} parent=1 // pred_region
      _
    $region9: #{ann_one_hid_forward.1} parent=1 // pred_fallthru
      _
    // Predicated region
    $region10: #{ann_one_hid_forward.1} parent=1 // pred_check
      _
    $region11: #{ann_one_hid_forward.1} parent=1 // pred_check_branch
      %16 = sbr.rel (0) target = $region13
    $region12: #{ann_one_hid_forward.1} parent=1 // pred_region
      _
    $region13: #{ann_one_hid_forward.1} parent=1 // pred_fallthru
      _
    // Predicated region
    $region14: #{ann_one_hid_forward.1} parent=1 // pred_check
      _
    $region15: #{ann_one_hid_forward.1} parent=1 // pred_check_branch
      %18 = sbr.rel (0) target = $region17
    $region16: #{ann_one_hid_forward.1} parent=1 // pred_region
      _
    $region17: #{ann_one_hid_forward.1} parent=1 // pred_fallthru
      _
    // Predicated region
    $region18: #{ann_one_hid_forward.1} parent=1 // pred_check
      _
    $region19: #{ann_one_hid_forward.1} parent=1 // pred_check_branch
      %20 = sbr.rel (0) target = $region21
    $region20: #{ann_one_hid_forward.1} parent=1 // pred_region
      _
    $region21: #{ann_one_hid_forward.1} parent=1 // pred_fallthru
      _
    %v21 = vld [vmem:[%s4] sm:$0xff]
    %v22 = vld [vmem:[%s0] sm:$0xff]
    %v23 = vld [vmem:[%s0 + $0x8] sm:$0xff]
    %v24 = vld [vmem:[%s0 + $0x10] sm:$0xff]
    %v25 = vld [vmem:[%s1] sm:$0xff]
    %v26 = vld [vmem:[%s1 + $0x8] sm:$0xff]
    %v27 = vld [vmem:[%s1 + $0x10] sm:$0xff]
    %29 = vset.pattern.permute.xlu0 0
    %30 = vperm.xlu0 %29, %v25
    %v31 = vpop.permute.xlu0 %30
    %34 = vset.pattern.permute.xlu0 0
    %35 = vperm.xlu0 %34, %v26
    %v36 = vpop.permute.xlu0 %35
    %39 = vset.pattern.permute.xlu0 0
    %40 = vperm.xlu0 %39, %v27
    %v41 = vpop.permute.xlu0 %40
    %vm43 = vcmask 64512
    %v45 = vsel %vm43, %v22, 0
    %v48 = vsel %vm43, %v23, 0
    %v51 = vsel %vm43, %v24, 0
    %53 = vmatprep.subr.mxu0 0.0
    %54 = vmatpush1.msra.mxu0 0.0
    %55 = vmatprep.subr.mxu0 0.0
    %56 = vmatpush1.msra.mxu0 0.0
    %57 = vmatprep.subr.mxu0 0.0
    %58 = vmatpush1.msra.mxu0 0.0
    %59 = vmatprep.subr.mxu0 0.0
    %60 = vmatpush1.msra.mxu0 0.0
    %61 = vmatprep.subr.mxu0 0.0
    %62 = vmatpush1.msra.mxu0 0.0
    %63 = vmatprep.subr.mxu0 0.0
    %64 = vmatpush1.msra.mxu0 0.0
    %65 = vmatprep.subr.mxu0 0.0
    %66 = vmatpush1.msra.mxu0 0.0
    %67 = vmatprep.subr.mxu0 0.0
    %68 = vmatpush1.msra.mxu0 0.0
    %69 = vmatprep.subr.mxu0 0.0
    %70 = vmatpush1.msra.mxu0 0.0
    %71 = vmatprep.subr.mxu0 0.0
    %72 = vmatpush1.msra.mxu0 0.0
    %73 = vmatprep.subr.mxu0 0.0
    %74 = vmatpush1.msra.mxu0 0.0
    %75 = vmatprep.subr.mxu0 0.0
    %76 = vmatpush1.msra.mxu0 0.0
    %77 = vmatprep.subr.mxu0 0.0
    %78 = vmatpush1.msra.mxu0 0.0
    %79 = vmatprep.subr.mxu0 0.0
    %80 = vmatpush1.msra.mxu0 0.0
    %81 = vmatprep.subr.mxu0 0.0
    %82 = vmatpush1.msra.mxu0 0.0
    %83 = vmatprep.subr.mxu0 0.0
    %v84 = vand.u32 %v21, 4294901760
    %85 = vmatpush1.msra.mxu0 %v84
    %86 = vmatprep.subr.mxu0 0.0
    %87 = vmatpush2.msra.mxu0 0.0
    %88 = vmatprep.subr.mxu0 0.0
    %89 = vmatpush2.msra.mxu0 0.0
    %90 = vmatprep.subr.mxu0 0.0
    %91 = vmatpush2.msra.mxu0 0.0
    %92 = vmatprep.subr.mxu0 0.0
    %93 = vmatpush2.msra.mxu0 0.0
    %94 = vmatprep.subr.mxu0 0.0
    %95 = vmatpush2.msra.mxu0 0.0
    %96 = vmatprep.subr.mxu0 0.0
    %97 = vmatpush2.msra.mxu0 0.0
    %98 = vmatprep.subr.mxu0 0.0
    %99 = vmatpush2.msra.mxu0 0.0
    %100 = vmatprep.subr.mxu0 0.0
    %101 = vmatpush2.msra.mxu0 0.0
    %102 = vmatprep.subr.mxu0 0.0
    %103 = vmatpush2.msra.mxu0 0.0
    %104 = vmatprep.subr.mxu0 0.0
    %105 = vmatpush2.msra.mxu0 0.0
    %106 = vmatprep.subr.mxu0 0.0
    %107 = vmatpush2.msra.mxu0 0.0
    %108 = vmatprep.subr.mxu0 0.0
    %109 = vmatpush2.msra.mxu0 0.0
    %110 = vmatprep.subr.mxu0 0.0
    %111 = vmatpush2.msra.mxu0 0.0
    %112 = vmatprep.subr.mxu0 0.0
    %113 = vmatpush2.msra.mxu0 0.0
    %114 = vmatprep.subr.mxu0 0.0
    %115 = vmatpush2.msra.mxu0 0.0
    %116 = vmatprep.subr.mxu0 0.0
    %117 = vmatpush2.msra.mxu0 0.0
    %118 = vmatprep.mubr.f32.mxu0 0.0
    %v119 = vand.u32 %v45, 4294901760
    %v120 = vsub.f32 %v45, %v119
    %v121 = vand.u32 %v120, 4294901760
    %v122 = vsub.f32 %v120, %v121
    %v123 = vand.u32 %v122, 4294901760
    %124 = vmatmul.mubr.f32.gmra.mxu0 %v123
    %v125 = vpop.f32.mrf.mxu0
    %v126 = vadd.f32 %v31, %v125
    %v127 = vpop.f32.mrf.mxu0
    %128 = vmatprep.mubr.f32.mxu0 0.0
    %v129 = vand.u32 %v48, 4294901760
    %v130 = vsub.f32 %v48, %v129
    %v131 = vand.u32 %v130, 4294901760
    %v132 = vsub.f32 %v130, %v131
    %v133 = vand.u32 %v132, 4294901760
    %134 = vmatmul.mubr.f32.gmra.mxu0 %v133
    %v135 = vpop.f32.mrf.mxu0
    %v136 = vadd.f32 %v36, %v135
    %v137 = vpop.f32.mrf.mxu0
    %138 = vmatprep.mubr.f32.mxu0 0.0
    %v139 = vand.u32 %v51, 4294901760
    %v140 = vsub.f32 %v51, %v139
    %v141 = vand.u32 %v140, 4294901760
    %v142 = vsub.f32 %v140, %v141
    %v143 = vand.u32 %v142, 4294901760
    %144 = vmatmul.mubr.f32.gmra.mxu0 %v143
    %v145 = vpop.f32.mrf.mxu0
    %v146 = vadd.f32 %v41, %v145
    %v147 = vpop.f32.mrf.mxu0
    %148 = vdwg.mxu0
    %149 = vmatprep.subr.mxu0 0.0
    %150 = vmatpush1.msra.mxu0 0.0
    %151 = vmatprep.subr.mxu0 0.0
    %152 = vmatpush1.msra.mxu0 0.0
    %153 = vmatprep.subr.mxu0 0.0
    %154 = vmatpush1.msra.mxu0 0.0
    %155 = vmatprep.subr.mxu0 0.0
    %156 = vmatpush1.msra.mxu0 0.0
    %157 = vmatprep.subr.mxu0 0.0
    %158 = vmatpush1.msra.mxu0 0.0
    %159 = vmatprep.subr.mxu0 0.0
    %160 = vmatpush1.msra.mxu0 0.0
    %161 = vmatprep.subr.mxu0 0.0
    %162 = vmatpush1.msra.mxu0 0.0
    %163 = vmatprep.subr.mxu0 0.0
    %164 = vmatpush1.msra.mxu0 0.0
    %165 = vmatprep.subr.mxu0 0.0
    %166 = vmatpush1.msra.mxu0 0.0
    %167 = vmatprep.subr.mxu0 0.0
    %168 = vmatpush1.msra.mxu0 0.0
    %169 = vmatprep.subr.mxu0 0.0
    %170 = vmatpush1.msra.mxu0 0.0
    %171 = vmatprep.subr.mxu0 0.0
    %172 = vmatpush1.msra.mxu0 0.0
    %173 = vmatprep.subr.mxu0 0.0
    %174 = vmatpush1.msra.mxu0 0.0
    %175 = vmatprep.subr.mxu0 0.0
    %176 = vmatpush1.msra.mxu0 0.0
    %177 = vmatprep.subr.mxu0 0.0
    %178 = vmatpush1.msra.mxu0 0.0
    %179 = vmatprep.subr.mxu0 0.0
    %v180 = vand.u32 %v21, 4294901760
    %v181 = vsub.f32 %v21, %v180
    %v182 = vand.u32 %v181, 4294901760
    %v183 = vsub.f32 %v181, %v182
    %v184 = vand.u32 %v183, 4294901760
    %185 = vmatpush1.msra.mxu0 %v184
    %186 = vmatprep.subr.mxu0 0.0
    %187 = vmatpush2.msra.mxu0 0.0
    %188 = vmatprep.subr.mxu0 0.0
    %189 = vmatpush2.msra.mxu0 0.0
    %190 = vmatprep.subr.mxu0 0.0
    %191 = vmatpush2.msra.mxu0 0.0
    %192 = vmatprep.subr.mxu0 0.0
    %193 = vmatpush2.msra.mxu0 0.0
    %194 = vmatprep.subr.mxu0 0.0
    %195 = vmatpush2.msra.mxu0 0.0
    %196 = vmatprep.subr.mxu0 0.0
    %197 = vmatpush2.msra.mxu0 0.0
    %198 = vmatprep.subr.mxu0 0.0
    %199 = vmatpush2.msra.mxu0 0.0
    %200 = vmatprep.subr.mxu0 0.0
    %201 = vmatpush2.msra.mxu0 0.0
    %202 = vmatprep.subr.mxu0 0.0
    %203 = vmatpush2.msra.mxu0 0.0
    %204 = vmatprep.subr.mxu0 0.0
    %205 = vmatpush2.msra.mxu0 0.0
    %206 = vmatprep.subr.mxu0 0.0
    %207 = vmatpush2.msra.mxu0 0.0
    %208 = vmatprep.subr.mxu0 0.0
    %209 = vmatpush2.msra.mxu0 0.0
    %210 = vmatprep.subr.mxu0 0.0
    %211 = vmatpush2.msra.mxu0 0.0
    %212 = vmatprep.subr.mxu0 0.0
    %213 = vmatpush2.msra.mxu0 0.0
    %214 = vmatprep.subr.mxu0 0.0
    %215 = vmatpush2.msra.mxu0 0.0
    %216 = vmatprep.subr.mxu0 0.0
    %217 = vmatpush2.msra.mxu0 0.0
    %218 = vmatprep.mubr.f32.mxu0 0.0
    %v219 = vand.u32 %v45, 4294901760
    %220 = vmatmul.mubr.f32.gmra.mxu0 %v219
    %v221 = vpop.f32.mrf.mxu0
    %v222 = vadd.f32 %v126, %v221
    %v223 = vpop.f32.mrf.mxu0
    %224 = vmatprep.mubr.f32.mxu0 0.0
    %v225 = vand.u32 %v48, 4294901760
    %226 = vmatmul.mubr.f32.gmra.mxu0 %v225
    %v227 = vpop.f32.mrf.mxu0
    %v228 = vadd.f32 %v136, %v227
    %v229 = vpop.f32.mrf.mxu0
    %230 = vmatprep.mubr.f32.mxu0 0.0
    %v231 = vand.u32 %v51, 4294901760
    %232 = vmatmul.mubr.f32.gmra.mxu0 %v231
    %v233 = vpop.f32.mrf.mxu0
    %v234 = vadd.f32 %v146, %v233
    %v235 = vpop.f32.mrf.mxu0
    %236 = vdwg.mxu0
    %237 = vmatprep.subr.mxu0 0.0
    %238 = vmatpush1.msra.mxu0 0.0
    %239 = vmatprep.subr.mxu0 0.0
    %240 = vmatpush1.msra.mxu0 0.0
    %241 = vmatprep.subr.mxu0 0.0
    %242 = vmatpush1.msra.mxu0 0.0
    %243 = vmatprep.subr.mxu0 0.0
    %244 = vmatpush1.msra.mxu0 0.0
    %245 = vmatprep.subr.mxu0 0.0
    %246 = vmatpush1.msra.mxu0 0.0
    %247 = vmatprep.subr.mxu0 0.0
    %248 = vmatpush1.msra.mxu0 0.0
    %249 = vmatprep.subr.mxu0 0.0
    %250 = vmatpush1.msra.mxu0 0.0
    %251 = vmatprep.subr.mxu0 0.0
    %252 = vmatpush1.msra.mxu0 0.0
    %253 = vmatprep.subr.mxu0 0.0
    %254 = vmatpush1.msra.mxu0 0.0
    %255 = vmatprep.subr.mxu0 0.0
    %256 = vmatpush1.msra.mxu0 0.0
    %257 = vmatprep.subr.mxu0 0.0
    %258 = vmatpush1.msra.mxu0 0.0
    %259 = vmatprep.subr.mxu0 0.0
    %260 = vmatpush1.msra.mxu0 0.0
    %261 = vmatprep.subr.mxu0 0.0
    %262 = vmatpush1.msra.mxu0 0.0
    %263 = vmatprep.subr.mxu0 0.0
    %264 = vmatpush1.msra.mxu0 0.0
    %265 = vmatprep.subr.mxu0 0.0
    %266 = vmatpush1.msra.mxu0 0.0
    %267 = vmatprep.subr.mxu0 0.0
    %v268 = vand.u32 %v21, 4294901760
    %v269 = vsub.f32 %v21, %v268
    %270 = vmatpush1.msra.mxu0 %v269
    %271 = vmatprep.subr.mxu0 0.0
    %272 = vmatpush2.msra.mxu0 0.0
    %273 = vmatprep.subr.mxu0 0.0
    %274 = vmatpush2.msra.mxu0 0.0
    %275 = vmatprep.subr.mxu0 0.0
    %276 = vmatpush2.msra.mxu0 0.0
    %277 = vmatprep.subr.mxu0 0.0
    %278 = vmatpush2.msra.mxu0 0.0
    %279 = vmatprep.subr.mxu0 0.0
    %280 = vmatpush2.msra.mxu0 0.0
    %281 = vmatprep.subr.mxu0 0.0
    %282 = vmatpush2.msra.mxu0 0.0
    %283 = vmatprep.subr.mxu0 0.0
    %284 = vmatpush2.msra.mxu0 0.0
    %285 = vmatprep.subr.mxu0 0.0
    %286 = vmatpush2.msra.mxu0 0.0
    %287 = vmatprep.subr.mxu0 0.0
    %288 = vmatpush2.msra.mxu0 0.0
    %289 = vmatprep.subr.mxu0 0.0
    %290 = vmatpush2.msra.mxu0 0.0
    %291 = vmatprep.subr.mxu0 0.0
    %292 = vmatpush2.msra.mxu0 0.0
    %293 = vmatprep.subr.mxu0 0.0
    %294 = vmatpush2.msra.mxu0 0.0
    %295 = vmatprep.subr.mxu0 0.0
    %296 = vmatpush2.msra.mxu0 0.0
    %297 = vmatprep.subr.mxu0 0.0
    %298 = vmatpush2.msra.mxu0 0.0
    %299 = vmatprep.subr.mxu0 0.0
    %300 = vmatpush2.msra.mxu0 0.0
    %301 = vmatprep.subr.mxu0 0.0
    %302 = vmatpush2.msra.mxu0 0.0
    %303 = vmatprep.mubr.f32.mxu0 0.0
    %v304 = vand.u32 %v45, 4294901760
    %v305 = vsub.f32 %v45, %v304
    %306 = vmatmul.mubr.f32.gmra.mxu0 %v305
    %v307 = vpop.f32.mrf.mxu0
    %v308 = vadd.f32 %v222, %v307
    %v309 = vpop.f32.mrf.mxu0
    %310 = vmatprep.mubr.f32.mxu0 0.0
    %v311 = vand.u32 %v48, 4294901760
    %v312 = vsub.f32 %v48, %v311
    %313 = vmatmul.mubr.f32.gmra.mxu0 %v312
    %v314 = vpop.f32.mrf.mxu0
    %v315 = vadd.f32 %v228, %v314
    %v316 = vpop.f32.mrf.mxu0
    %317 = vmatprep.mubr.f32.mxu0 0.0
    %v318 = vand.u32 %v51, 4294901760
    %v319 = vsub.f32 %v51, %v318
    %320 = vmatmul.mubr.f32.gmra.mxu0 %v319
    %v321 = vpop.f32.mrf.mxu0
    %v322 = vadd.f32 %v234, %v321
    %v323 = vpop.f32.mrf.mxu0
    %324 = vdwg.mxu0
    %325 = vmatprep.subr.mxu0 0.0
    %326 = vmatpush1.msra.mxu0 0.0
    %327 = vmatprep.subr.mxu0 0.0
    %328 = vmatpush1.msra.mxu0 0.0
    %329 = vmatprep.subr.mxu0 0.0
    %330 = vmatpush1.msra.mxu0 0.0
    %331 = vmatprep.subr.mxu0 0.0
    %332 = vmatpush1.msra.mxu0 0.0
    %333 = vmatprep.subr.mxu0 0.0
    %334 = vmatpush1.msra.mxu0 0.0
    %335 = vmatprep.subr.mxu0 0.0
    %336 = vmatpush1.msra.mxu0 0.0
    %337 = vmatprep.subr.mxu0 0.0
    %338 = vmatpush1.msra.mxu0 0.0
    %339 = vmatprep.subr.mxu0 0.0
    %340 = vmatpush1.msra.mxu0 0.0
    %341 = vmatprep.subr.mxu0 0.0
    %342 = vmatpush1.msra.mxu0 0.0
    %343 = vmatprep.subr.mxu0 0.0
    %344 = vmatpush1.msra.mxu0 0.0
    %345 = vmatprep.subr.mxu0 0.0
    %346 = vmatpush1.msra.mxu0 0.0
    %347 = vmatprep.subr.mxu0 0.0
    %348 = vmatpush1.msra.mxu0 0.0
    %349 = vmatprep.subr.mxu0 0.0
    %350 = vmatpush1.msra.mxu0 0.0
    %351 = vmatprep.subr.mxu0 0.0
    %352 = vmatpush1.msra.mxu0 0.0
    %353 = vmatprep.subr.mxu0 0.0
    %354 = vmatpush1.msra.mxu0 0.0
    %355 = vmatprep.subr.mxu0 0.0
    %v356 = vand.u32 %v21, 4294901760
    %357 = vmatpush1.msra.mxu0 %v356
    %358 = vmatprep.subr.mxu0 0.0
    %359 = vmatpush2.msra.mxu0 0.0
    %360 = vmatprep.subr.mxu0 0.0
    %361 = vmatpush2.msra.mxu0 0.0
    %362 = vmatprep.subr.mxu0 0.0
    %363 = vmatpush2.msra.mxu0 0.0
    %364 = vmatprep.subr.mxu0 0.0
    %365 = vmatpush2.msra.mxu0 0.0
    %366 = vmatprep.subr.mxu0 0.0
    %367 = vmatpush2.msra.mxu0 0.0
    %368 = vmatprep.subr.mxu0 0.0
    %369 = vmatpush2.msra.mxu0 0.0
    %370 = vmatprep.subr.mxu0 0.0
    %371 = vmatpush2.msra.mxu0 0.0
    %372 = vmatprep.subr.mxu0 0.0
    %373 = vmatpush2.msra.mxu0 0.0
    %374 = vmatprep.subr.mxu0 0.0
    %375 = vmatpush2.msra.mxu0 0.0
    %376 = vmatprep.subr.mxu0 0.0
    %377 = vmatpush2.msra.mxu0 0.0
    %378 = vmatprep.subr.mxu0 0.0
    %379 = vmatpush2.msra.mxu0 0.0
    %380 = vmatprep.subr.mxu0 0.0
    %381 = vmatpush2.msra.mxu0 0.0
    %382 = vmatprep.subr.mxu0 0.0
    %383 = vmatpush2.msra.mxu0 0.0
    %384 = vmatprep.subr.mxu0 0.0
    %385 = vmatpush2.msra.mxu0 0.0
    %386 = vmatprep.subr.mxu0 0.0
    %387 = vmatpush2.msra.mxu0 0.0
    %388 = vmatprep.subr.mxu0 0.0
    %389 = vmatpush2.msra.mxu0 0.0
    %390 = vmatprep.mubr.f32.mxu0 0.0
    %v391 = vand.u32 %v45, 4294901760
    %v392 = vsub.f32 %v45, %v391
    %v393 = vand.u32 %v392, 4294901760
    %394 = vmatmul.mubr.f32.gmra.mxu0 %v393
    %v395 = vpop.f32.mrf.mxu0
    %v396 = vadd.f32 %v308, %v395
    %v397 = vpop.f32.mrf.mxu0
    %398 = vmatprep.mubr.f32.mxu0 0.0
    %v399 = vand.u32 %v48, 4294901760
    %v400 = vsub.f32 %v48, %v399
    %v401 = vand.u32 %v400, 4294901760
    %402 = vmatmul.mubr.f32.gmra.mxu0 %v401
    %v403 = vpop.f32.mrf.mxu0
    %v404 = vadd.f32 %v315, %v403
    %v405 = vpop.f32.mrf.mxu0
    %406 = vmatprep.mubr.f32.mxu0 0.0
    %v407 = vand.u32 %v51, 4294901760
    %v408 = vsub.f32 %v51, %v407
    %v409 = vand.u32 %v408, 4294901760
    %410 = vmatmul.mubr.f32.gmra.mxu0 %v409
    %v411 = vpop.f32.mrf.mxu0
    %v412 = vadd.f32 %v322, %v411
    %v413 = vpop.f32.mrf.mxu0
    %414 = vdwg.mxu0
    %415 = vmatprep.subr.mxu0 0.0
    %416 = vmatpush1.msra.mxu0 0.0
    %417 = vmatprep.subr.mxu0 0.0
    %418 = vmatpush1.msra.mxu0 0.0
    %419 = vmatprep.subr.mxu0 0.0
    %420 = vmatpush1.msra.mxu0 0.0
    %421 = vmatprep.subr.mxu0 0.0
    %422 = vmatpush1.msra.mxu0 0.0
    %423 = vmatprep.subr.mxu0 0.0
    %424 = vmatpush1.msra.mxu0 0.0
    %425 = vmatprep.subr.mxu0 0.0
    %426 = vmatpush1.msra.mxu0 0.0
    %427 = vmatprep.subr.mxu0 0.0
    %428 = vmatpush1.msra.mxu0 0.0
    %429 = vmatprep.subr.mxu0 0.0
    %430 = vmatpush1.msra.mxu0 0.0
    %431 = vmatprep.subr.mxu0 0.0
    %432 = vmatpush1.msra.mxu0 0.0
    %433 = vmatprep.subr.mxu0 0.0
    %434 = vmatpush1.msra.mxu0 0.0
    %435 = vmatprep.subr.mxu0 0.0
    %436 = vmatpush1.msra.mxu0 0.0
    %437 = vmatprep.subr.mxu0 0.0
    %438 = vmatpush1.msra.mxu0 0.0
    %439 = vmatprep.subr.mxu0 0.0
    %440 = vmatpush1.msra.mxu0 0.0
    %441 = vmatprep.subr.mxu0 0.0
    %442 = vmatpush1.msra.mxu0 0.0
    %443 = vmatprep.subr.mxu0 0.0
    %444 = vmatpush1.msra.mxu0 0.0
    %445 = vmatprep.subr.mxu0 0.0
    %v446 = vand.u32 %v21, 4294901760
    %v447 = vsub.f32 %v21, %v446
    %v448 = vand.u32 %v447, 4294901760
    %449 = vmatpush1.msra.mxu0 %v448
    %450 = vmatprep.subr.mxu0 0.0
    %451 = vmatpush2.msra.mxu0 0.0
    %452 = vmatprep.subr.mxu0 0.0
    %453 = vmatpush2.msra.mxu0 0.0
    %454 = vmatprep.subr.mxu0 0.0
    %455 = vmatpush2.msra.mxu0 0.0
    %456 = vmatprep.subr.mxu0 0.0
    %457 = vmatpush2.msra.mxu0 0.0
    %458 = vmatprep.subr.mxu0 0.0
    %459 = vmatpush2.msra.mxu0 0.0
    %460 = vmatprep.subr.mxu0 0.0
    %461 = vmatpush2.msra.mxu0 0.0
    %462 = vmatprep.subr.mxu0 0.0
    %463 = vmatpush2.msra.mxu0 0.0
    %464 = vmatprep.subr.mxu0 0.0
    %465 = vmatpush2.msra.mxu0 0.0
    %466 = vmatprep.subr.mxu0 0.0
    %467 = vmatpush2.msra.mxu0 0.0
    %468 = vmatprep.subr.mxu0 0.0
    %469 = vmatpush2.msra.mxu0 0.0
    %470 = vmatprep.subr.mxu0 0.0
    %471 = vmatpush2.msra.mxu0 0.0
    %472 = vmatprep.subr.mxu0 0.0
    %473 = vmatpush2.msra.mxu0 0.0
    %474 = vmatprep.subr.mxu0 0.0
    %475 = vmatpush2.msra.mxu0 0.0
    %476 = vmatprep.subr.mxu0 0.0
    %477 = vmatpush2.msra.mxu0 0.0
    %478 = vmatprep.subr.mxu0 0.0
    %479 = vmatpush2.msra.mxu0 0.0
    %480 = vmatprep.subr.mxu0 0.0
    %481 = vmatpush2.msra.mxu0 0.0
    %482 = vmatprep.mubr.f32.mxu0 0.0
    %v483 = vand.u32 %v45, 4294901760
    %484 = vmatmul.mubr.f32.gmra.mxu0 %v483
    %v485 = vpop.f32.mrf.mxu0
    %v486 = vadd.f32 %v396, %v485
    %v487 = vpop.f32.mrf.mxu0
    %488 = vmatprep.mubr.f32.mxu0 0.0
    %v489 = vand.u32 %v48, 4294901760
    %490 = vmatmul.mubr.f32.gmra.mxu0 %v489
    %v491 = vpop.f32.mrf.mxu0
    %v492 = vadd.f32 %v404, %v491
    %v493 = vpop.f32.mrf.mxu0
    %494 = vmatprep.mubr.f32.mxu0 0.0
    %v495 = vand.u32 %v51, 4294901760
    %496 = vmatmul.mubr.f32.gmra.mxu0 %v495
    %v497 = vpop.f32.mrf.mxu0
    %v498 = vadd.f32 %v412, %v497
    %v499 = vpop.f32.mrf.mxu0
    %500 = vdwg.mxu0
    %501 = vmatprep.subr.mxu0 0.0
    %502 = vmatpush1.msra.mxu0 0.0
    %503 = vmatprep.subr.mxu0 0.0
    %504 = vmatpush1.msra.mxu0 0.0
    %505 = vmatprep.subr.mxu0 0.0
    %506 = vmatpush1.msra.mxu0 0.0
    %507 = vmatprep.subr.mxu0 0.0
    %508 = vmatpush1.msra.mxu0 0.0
    %509 = vmatprep.subr.mxu0 0.0
    %510 = vmatpush1.msra.mxu0 0.0
    %511 = vmatprep.subr.mxu0 0.0
    %512 = vmatpush1.msra.mxu0 0.0
    %513 = vmatprep.subr.mxu0 0.0
    %514 = vmatpush1.msra.mxu0 0.0
    %515 = vmatprep.subr.mxu0 0.0
    %516 = vmatpush1.msra.mxu0 0.0
    %517 = vmatprep.subr.mxu0 0.0
    %518 = vmatpush1.msra.mxu0 0.0
    %519 = vmatprep.subr.mxu0 0.0
    %520 = vmatpush1.msra.mxu0 0.0
    %521 = vmatprep.subr.mxu0 0.0
    %522 = vmatpush1.msra.mxu0 0.0
    %523 = vmatprep.subr.mxu0 0.0
    %524 = vmatpush1.msra.mxu0 0.0
    %525 = vmatprep.subr.mxu0 0.0
    %526 = vmatpush1.msra.mxu0 0.0
    %527 = vmatprep.subr.mxu0 0.0
    %528 = vmatpush1.msra.mxu0 0.0
    %529 = vmatprep.subr.mxu0 0.0
    %530 = vmatpush1.msra.mxu0 0.0
    %531 = vmatprep.subr.mxu0 0.0
    %v532 = vand.u32 %v21, 4294901760
    %533 = vmatpush1.msra.mxu0 %v532
    %534 = vmatprep.subr.mxu0 0.0
    %535 = vmatpush2.msra.mxu0 0.0
    %536 = vmatprep.subr.mxu0 0.0
    %537 = vmatpush2.msra.mxu0 0.0
    %538 = vmatprep.subr.mxu0 0.0
    %539 = vmatpush2.msra.mxu0 0.0
    %540 = vmatprep.subr.mxu0 0.0
    %541 = vmatpush2.msra.mxu0 0.0
    %542 = vmatprep.subr.mxu0 0.0
    %543 = vmatpush2.msra.mxu0 0.0
    %544 = vmatprep.subr.mxu0 0.0
    %545 = vmatpush2.msra.mxu0 0.0
    %546 = vmatprep.subr.mxu0 0.0
    %547 = vmatpush2.msra.mxu0 0.0
    %548 = vmatprep.subr.mxu0 0.0
    %549 = vmatpush2.msra.mxu0 0.0
    %550 = vmatprep.subr.mxu0 0.0
    %551 = vmatpush2.msra.mxu0 0.0
    %552 = vmatprep.subr.mxu0 0.0
    %553 = vmatpush2.msra.mxu0 0.0
    %554 = vmatprep.subr.mxu0 0.0
    %555 = vmatpush2.msra.mxu0 0.0
    %556 = vmatprep.subr.mxu0 0.0
    %557 = vmatpush2.msra.mxu0 0.0
    %558 = vmatprep.subr.mxu0 0.0
    %559 = vmatpush2.msra.mxu0 0.0
    %560 = vmatprep.subr.mxu0 0.0
    %561 = vmatpush2.msra.mxu0 0.0
    %562 = vmatprep.subr.mxu0 0.0
    %563 = vmatpush2.msra.mxu0 0.0
    %564 = vmatprep.subr.mxu0 0.0
    %565 = vmatpush2.msra.mxu0 0.0
    %566 = vmatprep.mubr.f32.mxu0 0.0
    %v567 = vand.u32 %v45, 4294901760
    %568 = vmatmul.mubr.f32.gmra.mxu0 %v567
    %v569 = vpop.f32.mrf.mxu0
    %v570 = vadd.f32 %v486, %v569
    %v571 = vpop.f32.mrf.mxu0
    %572 = vmatprep.mubr.f32.mxu0 0.0
    %v573 = vand.u32 %v48, 4294901760
    %574 = vmatmul.mubr.f32.gmra.mxu0 %v573
    %v575 = vpop.f32.mrf.mxu0
    %v576 = vadd.f32 %v492, %v575
    %v577 = vpop.f32.mrf.mxu0
    %578 = vmatprep.mubr.f32.mxu0 0.0
    %v579 = vand.u32 %v51, 4294901760
    %580 = vmatmul.mubr.f32.gmra.mxu0 %v579
    %v581 = vpop.f32.mrf.mxu0
    %v582 = vadd.f32 %v498, %v581
    %v583 = vpop.f32.mrf.mxu0
    %584 = vdwg.mxu0
    %v585 = vmax.f32 %v570, 0.0
    %v586 = vmax.f32 %v576, 0.0
    %v587 = vmax.f32 %v582, 0.0
    %v588 = vld [vmem:[%s2] sm:$0xff]
    %v589 = vld [vmem:[%s3] sm:$0xff]
    %591 = vset.pattern.permute.xlu0 0
    %592 = vperm.xlu0 %591, %v589
    %v593 = vpop.permute.xlu0 %592
    %vm595 = vcmask 195584
    %v597 = vsel %vm595, %v588, 0
    %599 = vmatprep.subr.mxu0 0.0
    %600 = vmatpush1.msra.mxu0 0.0
    %601 = vmatprep.subr.mxu0 0.0
    %602 = vmatpush1.msra.mxu0 0.0
    %603 = vmatprep.subr.mxu0 0.0
    %604 = vmatpush1.msra.mxu0 0.0
    %605 = vmatprep.subr.mxu0 0.0
    %606 = vmatpush1.msra.mxu0 0.0
    %607 = vmatprep.subr.mxu0 0.0
    %608 = vmatpush1.msra.mxu0 0.0
    %609 = vmatprep.subr.mxu0 0.0
    %610 = vmatpush1.msra.mxu0 0.0
    %611 = vmatprep.subr.mxu0 0.0
    %612 = vmatpush1.msra.mxu0 0.0
    %613 = vmatprep.subr.mxu0 0.0
    %614 = vmatpush1.msra.mxu0 0.0
    %615 = vmatprep.subr.mxu0 0.0
    %616 = vmatpush1.msra.mxu0 0.0
    %617 = vmatprep.subr.mxu0 0.0
    %618 = vmatpush1.msra.mxu0 0.0
    %619 = vmatprep.subr.mxu0 0.0
    %620 = vmatpush1.msra.mxu0 0.0
    %621 = vmatprep.subr.mxu0 0.0
    %622 = vmatpush1.msra.mxu0 0.0
    %623 = vmatprep.subr.mxu0 0.0
    %624 = vmatpush1.msra.mxu0 0.0
    %625 = vmatprep.subr.mxu0 0.0
    %v626 = vand.u32 %v587, 4294901760
    %627 = vmatpush1.msra.mxu0 %v626
    %628 = vmatprep.subr.mxu0 0.0
    %v629 = vand.u32 %v586, 4294901760
    %630 = vmatpush1.msra.mxu0 %v629
    %631 = vmatprep.subr.mxu0 0.0
    %v632 = vand.u32 %v585, 4294901760
    %633 = vmatpush1.msra.mxu0 %v632
    %634 = vmatprep.subr.mxu0 0.0
    %635 = vmatpush2.msra.mxu0 0.0
    %636 = vmatprep.subr.mxu0 0.0
    %637 = vmatpush2.msra.mxu0 0.0
    %638 = vmatprep.subr.mxu0 0.0
    %639 = vmatpush2.msra.mxu0 0.0
    %640 = vmatprep.subr.mxu0 0.0
    %641 = vmatpush2.msra.mxu0 0.0
    %642 = vmatprep.subr.mxu0 0.0
    %643 = vmatpush2.msra.mxu0 0.0
    %644 = vmatprep.subr.mxu0 0.0
    %645 = vmatpush2.msra.mxu0 0.0
    %646 = vmatprep.subr.mxu0 0.0
    %647 = vmatpush2.msra.mxu0 0.0
    %648 = vmatprep.subr.mxu0 0.0
    %649 = vmatpush2.msra.mxu0 0.0
    %650 = vmatprep.subr.mxu0 0.0
    %651 = vmatpush2.msra.mxu0 0.0
    %652 = vmatprep.subr.mxu0 0.0
    %653 = vmatpush2.msra.mxu0 0.0
    %654 = vmatprep.subr.mxu0 0.0
    %655 = vmatpush2.msra.mxu0 0.0
    %656 = vmatprep.subr.mxu0 0.0
    %657 = vmatpush2.msra.mxu0 0.0
    %658 = vmatprep.subr.mxu0 0.0
    %659 = vmatpush2.msra.mxu0 0.0
    %660 = vmatprep.subr.mxu0 0.0
    %661 = vmatpush2.msra.mxu0 0.0
    %662 = vmatprep.subr.mxu0 0.0
    %663 = vmatpush2.msra.mxu0 0.0
    %664 = vmatprep.subr.mxu0 0.0
    %665 = vmatpush2.msra.mxu0 0.0
    %666 = vmatprep.mubr.f32.mxu0 0.0
    %v667 = vand.u32 %v597, 4294901760
    %v668 = vsub.f32 %v597, %v667
    %v669 = vand.u32 %v668, 4294901760
    %v670 = vsub.f32 %v668, %v669
    %v671 = vand.u32 %v670, 4294901760
    %672 = vmatmul.mubr.f32.gmra.mxu0 %v671
    %v673 = vpop.f32.mrf.mxu0
    %v674 = vadd.f32 %v593, %v673
    %v675 = vpop.f32.mrf.mxu0
    %676 = vdwg.mxu0
    %677 = vmatprep.subr.mxu0 0.0
    %678 = vmatpush1.msra.mxu0 0.0
    %679 = vmatprep.subr.mxu0 0.0
    %680 = vmatpush1.msra.mxu0 0.0
    %681 = vmatprep.subr.mxu0 0.0
    %682 = vmatpush1.msra.mxu0 0.0
    %683 = vmatprep.subr.mxu0 0.0
    %684 = vmatpush1.msra.mxu0 0.0
    %685 = vmatprep.subr.mxu0 0.0
    %686 = vmatpush1.msra.mxu0 0.0
    %687 = vmatprep.subr.mxu0 0.0
    %688 = vmatpush1.msra.mxu0 0.0
    %689 = vmatprep.subr.mxu0 0.0
    %690 = vmatpush1.msra.mxu0 0.0
    %691 = vmatprep.subr.mxu0 0.0
    %692 = vmatpush1.msra.mxu0 0.0
    %693 = vmatprep.subr.mxu0 0.0
    %694 = vmatpush1.msra.mxu0 0.0
    %695 = vmatprep.subr.mxu0 0.0
    %696 = vmatpush1.msra.mxu0 0.0
    %697 = vmatprep.subr.mxu0 0.0
    %698 = vmatpush1.msra.mxu0 0.0
    %699 = vmatprep.subr.mxu0 0.0
    %700 = vmatpush1.msra.mxu0 0.0
    %701 = vmatprep.subr.mxu0 0.0
    %702 = vmatpush1.msra.mxu0 0.0
    %703 = vmatprep.subr.mxu0 0.0
    %v704 = vand.u32 %v587, 4294901760
    %v705 = vsub.f32 %v587, %v704
    %v706 = vand.u32 %v705, 4294901760
    %v707 = vsub.f32 %v705, %v706
    %v708 = vand.u32 %v707, 4294901760
    %709 = vmatpush1.msra.mxu0 %v708
    %710 = vmatprep.subr.mxu0 0.0
    %v711 = vand.u32 %v586, 4294901760
    %v712 = vsub.f32 %v586, %v711
    %v713 = vand.u32 %v712, 4294901760
    %v714 = vsub.f32 %v712, %v713
    %v715 = vand.u32 %v714, 4294901760
    %716 = vmatpush1.msra.mxu0 %v715
    %717 = vmatprep.subr.mxu0 0.0
    %v718 = vand.u32 %v585, 4294901760
    %v719 = vsub.f32 %v585, %v718
    %v720 = vand.u32 %v719, 4294901760
    %v721 = vsub.f32 %v719, %v720
    %v722 = vand.u32 %v721, 4294901760
    %723 = vmatpush1.msra.mxu0 %v722
    %724 = vmatprep.subr.mxu0 0.0
    %725 = vmatpush2.msra.mxu0 0.0
    %726 = vmatprep.subr.mxu0 0.0
    %727 = vmatpush2.msra.mxu0 0.0
    %728 = vmatprep.subr.mxu0 0.0
    %729 = vmatpush2.msra.mxu0 0.0
    %730 = vmatprep.subr.mxu0 0.0
    %731 = vmatpush2.msra.mxu0 0.0
    %732 = vmatprep.subr.mxu0 0.0
    %733 = vmatpush2.msra.mxu0 0.0
    %734 = vmatprep.subr.mxu0 0.0
    %735 = vmatpush2.msra.mxu0 0.0
    %736 = vmatprep.subr.mxu0 0.0
    %737 = vmatpush2.msra.mxu0 0.0
    %738 = vmatprep.subr.mxu0 0.0
    %739 = vmatpush2.msra.mxu0 0.0
    %740 = vmatprep.subr.mxu0 0.0
    %741 = vmatpush2.msra.mxu0 0.0
    %742 = vmatprep.subr.mxu0 0.0
    %743 = vmatpush2.msra.mxu0 0.0
    %744 = vmatprep.subr.mxu0 0.0
    %745 = vmatpush2.msra.mxu0 0.0
    %746 = vmatprep.subr.mxu0 0.0
    %747 = vmatpush2.msra.mxu0 0.0
    %748 = vmatprep.subr.mxu0 0.0
    %749 = vmatpush2.msra.mxu0 0.0
    %750 = vmatprep.subr.mxu0 0.0
    %751 = vmatpush2.msra.mxu0 0.0
    %752 = vmatprep.subr.mxu0 0.0
    %753 = vmatpush2.msra.mxu0 0.0
    %754 = vmatprep.subr.mxu0 0.0
    %755 = vmatpush2.msra.mxu0 0.0
    %756 = vmatprep.mubr.f32.mxu0 0.0
    %v757 = vand.u32 %v597, 4294901760
    %758 = vmatmul.mubr.f32.gmra.mxu0 %v757
    %v759 = vpop.f32.mrf.mxu0
    %v760 = vadd.f32 %v674, %v759
    %v761 = vpop.f32.mrf.mxu0
    %762 = vdwg.mxu0
    %763 = vmatprep.subr.mxu0 0.0
    %764 = vmatpush1.msra.mxu0 0.0
    %765 = vmatprep.subr.mxu0 0.0
    %766 = vmatpush1.msra.mxu0 0.0
    %767 = vmatprep.subr.mxu0 0.0
    %768 = vmatpush1.msra.mxu0 0.0
    %769 = vmatprep.subr.mxu0 0.0
    %770 = vmatpush1.msra.mxu0 0.0
    %771 = vmatprep.subr.mxu0 0.0
    %772 = vmatpush1.msra.mxu0 0.0
    %773 = vmatprep.subr.mxu0 0.0
    %774 = vmatpush1.msra.mxu0 0.0
    %775 = vmatprep.subr.mxu0 0.0
    %776 = vmatpush1.msra.mxu0 0.0
    %777 = vmatprep.subr.mxu0 0.0
    %778 = vmatpush1.msra.mxu0 0.0
    %779 = vmatprep.subr.mxu0 0.0
    %780 = vmatpush1.msra.mxu0 0.0
    %781 = vmatprep.subr.mxu0 0.0
    %782 = vmatpush1.msra.mxu0 0.0
    %783 = vmatprep.subr.mxu0 0.0
    %784 = vmatpush1.msra.mxu0 0.0
    %785 = vmatprep.subr.mxu0 0.0
    %786 = vmatpush1.msra.mxu0 0.0
    %787 = vmatprep.subr.mxu0 0.0
    %788 = vmatpush1.msra.mxu0 0.0
    %789 = vmatprep.subr.mxu0 0.0
    %v790 = vand.u32 %v587, 4294901760
    %v791 = vsub.f32 %v587, %v790
    %792 = vmatpush1.msra.mxu0 %v791
    %793 = vmatprep.subr.mxu0 0.0
    %v794 = vand.u32 %v586, 4294901760
    %v795 = vsub.f32 %v586, %v794
    %796 = vmatpush1.msra.mxu0 %v795
    %797 = vmatprep.subr.mxu0 0.0
    %v798 = vand.u32 %v585, 4294901760
    %v799 = vsub.f32 %v585, %v798
    %800 = vmatpush1.msra.mxu0 %v799
    %801 = vmatprep.subr.mxu0 0.0
    %802 = vmatpush2.msra.mxu0 0.0
    %803 = vmatprep.subr.mxu0 0.0
    %804 = vmatpush2.msra.mxu0 0.0
    %805 = vmatprep.subr.mxu0 0.0
    %806 = vmatpush2.msra.mxu0 0.0
    %807 = vmatprep.subr.mxu0 0.0
    %808 = vmatpush2.msra.mxu0 0.0
    %809 = vmatprep.subr.mxu0 0.0
    %810 = vmatpush2.msra.mxu0 0.0
    %811 = vmatprep.subr.mxu0 0.0
    %812 = vmatpush2.msra.mxu0 0.0
    %813 = vmatprep.subr.mxu0 0.0
    %814 = vmatpush2.msra.mxu0 0.0
    %815 = vmatprep.subr.mxu0 0.0
    %816 = vmatpush2.msra.mxu0 0.0
    %817 = vmatprep.subr.mxu0 0.0
    %818 = vmatpush2.msra.mxu0 0.0
    %819 = vmatprep.subr.mxu0 0.0
    %820 = vmatpush2.msra.mxu0 0.0
    %821 = vmatprep.subr.mxu0 0.0
    %822 = vmatpush2.msra.mxu0 0.0
    %823 = vmatprep.subr.mxu0 0.0
    %824 = vmatpush2.msra.mxu0 0.0
    %825 = vmatprep.subr.mxu0 0.0
    %826 = vmatpush2.msra.mxu0 0.0
    %827 = vmatprep.subr.mxu0 0.0
    %828 = vmatpush2.msra.mxu0 0.0
    %829 = vmatprep.subr.mxu0 0.0
    %830 = vmatpush2.msra.mxu0 0.0
    %831 = vmatprep.subr.mxu0 0.0
    %832 = vmatpush2.msra.mxu0 0.0
    %833 = vmatprep.mubr.f32.mxu0 0.0
    %v834 = vand.u32 %v597, 4294901760
    %v835 = vsub.f32 %v597, %v834
    %836 = vmatmul.mubr.f32.gmra.mxu0 %v835
    %v837 = vpop.f32.mrf.mxu0
    %v838 = vadd.f32 %v760, %v837
    %v839 = vpop.f32.mrf.mxu0
    %840 = vdwg.mxu0
    %841 = vmatprep.subr.mxu0 0.0
    %842 = vmatpush1.msra.mxu0 0.0
    %843 = vmatprep.subr.mxu0 0.0
    %844 = vmatpush1.msra.mxu0 0.0
    %845 = vmatprep.subr.mxu0 0.0
    %846 = vmatpush1.msra.mxu0 0.0
    %847 = vmatprep.subr.mxu0 0.0
    %848 = vmatpush1.msra.mxu0 0.0
    %849 = vmatprep.subr.mxu0 0.0
    %850 = vmatpush1.msra.mxu0 0.0
    %851 = vmatprep.subr.mxu0 0.0
    %852 = vmatpush1.msra.mxu0 0.0
    %853 = vmatprep.subr.mxu0 0.0
    %854 = vmatpush1.msra.mxu0 0.0
    %855 = vmatprep.subr.mxu0 0.0
    %856 = vmatpush1.msra.mxu0 0.0
    %857 = vmatprep.subr.mxu0 0.0
    %858 = vmatpush1.msra.mxu0 0.0
    %859 = vmatprep.subr.mxu0 0.0
    %860 = vmatpush1.msra.mxu0 0.0
    %861 = vmatprep.subr.mxu0 0.0
    %862 = vmatpush1.msra.mxu0 0.0
    %863 = vmatprep.subr.mxu0 0.0
    %864 = vmatpush1.msra.mxu0 0.0
    %865 = vmatprep.subr.mxu0 0.0
    %866 = vmatpush1.msra.mxu0 0.0
    %867 = vmatprep.subr.mxu0 0.0
    %v868 = vand.u32 %v587, 4294901760
    %869 = vmatpush1.msra.mxu0 %v868
    %870 = vmatprep.subr.mxu0 0.0
    %v871 = vand.u32 %v586, 4294901760
    %872 = vmatpush1.msra.mxu0 %v871
    %873 = vmatprep.subr.mxu0 0.0
    %v874 = vand.u32 %v585, 4294901760
    %875 = vmatpush1.msra.mxu0 %v874
    %876 = vmatprep.subr.mxu0 0.0
    %877 = vmatpush2.msra.mxu0 0.0
    %878 = vmatprep.subr.mxu0 0.0
    %879 = vmatpush2.msra.mxu0 0.0
    %880 = vmatprep.subr.mxu0 0.0
    %881 = vmatpush2.msra.mxu0 0.0
    %882 = vmatprep.subr.mxu0 0.0
    %883 = vmatpush2.msra.mxu0 0.0
    %884 = vmatprep.subr.mxu0 0.0
    %885 = vmatpush2.msra.mxu0 0.0
    %886 = vmatprep.subr.mxu0 0.0
    %887 = vmatpush2.msra.mxu0 0.0
    %888 = vmatprep.subr.mxu0 0.0
    %889 = vmatpush2.msra.mxu0 0.0
    %890 = vmatprep.subr.mxu0 0.0
    %891 = vmatpush2.msra.mxu0 0.0
    %892 = vmatprep.subr.mxu0 0.0
    %893 = vmatpush2.msra.mxu0 0.0
    %894 = vmatprep.subr.mxu0 0.0
    %895 = vmatpush2.msra.mxu0 0.0
    %896 = vmatprep.subr.mxu0 0.0
    %897 = vmatpush2.msra.mxu0 0.0
    %898 = vmatprep.subr.mxu0 0.0
    %899 = vmatpush2.msra.mxu0 0.0
    %900 = vmatprep.subr.mxu0 0.0
    %901 = vmatpush2.msra.mxu0 0.0
    %902 = vmatprep.subr.mxu0 0.0
    %903 = vmatpush2.msra.mxu0 0.0
    %904 = vmatprep.subr.mxu0 0.0
    %905 = vmatpush2.msra.mxu0 0.0
    %906 = vmatprep.subr.mxu0 0.0
    %907 = vmatpush2.msra.mxu0 0.0
    %908 = vmatprep.mubr.f32.mxu0 0.0
    %v909 = vand.u32 %v597, 4294901760
    %v910 = vsub.f32 %v597, %v909
    %v911 = vand.u32 %v910, 4294901760
    %912 = vmatmul.mubr.f32.gmra.mxu0 %v911
    %v913 = vpop.f32.mrf.mxu0
    %v914 = vadd.f32 %v838, %v913
    %v915 = vpop.f32.mrf.mxu0
    %916 = vdwg.mxu0
    %917 = vmatprep.subr.mxu0 0.0
    %918 = vmatpush1.msra.mxu0 0.0
    %919 = vmatprep.subr.mxu0 0.0
    %920 = vmatpush1.msra.mxu0 0.0
    %921 = vmatprep.subr.mxu0 0.0
    %922 = vmatpush1.msra.mxu0 0.0
    %923 = vmatprep.subr.mxu0 0.0
    %924 = vmatpush1.msra.mxu0 0.0
    %925 = vmatprep.subr.mxu0 0.0
    %926 = vmatpush1.msra.mxu0 0.0
    %927 = vmatprep.subr.mxu0 0.0
    %928 = vmatpush1.msra.mxu0 0.0
    %929 = vmatprep.subr.mxu0 0.0
    %930 = vmatpush1.msra.mxu0 0.0
    %931 = vmatprep.subr.mxu0 0.0
    %932 = vmatpush1.msra.mxu0 0.0
    %933 = vmatprep.subr.mxu0 0.0
    %934 = vmatpush1.msra.mxu0 0.0
    %935 = vmatprep.subr.mxu0 0.0
    %936 = vmatpush1.msra.mxu0 0.0
    %937 = vmatprep.subr.mxu0 0.0
    %938 = vmatpush1.msra.mxu0 0.0
    %939 = vmatprep.subr.mxu0 0.0
    %940 = vmatpush1.msra.mxu0 0.0
    %941 = vmatprep.subr.mxu0 0.0
    %942 = vmatpush1.msra.mxu0 0.0
    %943 = vmatprep.subr.mxu0 0.0
    %v944 = vand.u32 %v587, 4294901760
    %v945 = vsub.f32 %v587, %v944
    %v946 = vand.u32 %v945, 4294901760
    %947 = vmatpush1.msra.mxu0 %v946
    %948 = vmatprep.subr.mxu0 0.0
    %v949 = vand.u32 %v586, 4294901760
    %v950 = vsub.f32 %v586, %v949
    %v951 = vand.u32 %v950, 4294901760
    %952 = vmatpush1.msra.mxu0 %v951
    %953 = vmatprep.subr.mxu0 0.0
    %v954 = vand.u32 %v585, 4294901760
    %v955 = vsub.f32 %v585, %v954
    %v956 = vand.u32 %v955, 4294901760
    %957 = vmatpush1.msra.mxu0 %v956
    %958 = vmatprep.subr.mxu0 0.0
    %959 = vmatpush2.msra.mxu0 0.0
    %960 = vmatprep.subr.mxu0 0.0
    %961 = vmatpush2.msra.mxu0 0.0
    %962 = vmatprep.subr.mxu0 0.0
    %963 = vmatpush2.msra.mxu0 0.0
    %964 = vmatprep.subr.mxu0 0.0
    %965 = vmatpush2.msra.mxu0 0.0
    %966 = vmatprep.subr.mxu0 0.0
    %967 = vmatpush2.msra.mxu0 0.0
    %968 = vmatprep.subr.mxu0 0.0
    %969 = vmatpush2.msra.mxu0 0.0
    %970 = vmatprep.subr.mxu0 0.0
    %971 = vmatpush2.msra.mxu0 0.0
    %972 = vmatprep.subr.mxu0 0.0
    %973 = vmatpush2.msra.mxu0 0.0
    %974 = vmatprep.subr.mxu0 0.0
    %975 = vmatpush2.msra.mxu0 0.0
    %976 = vmatprep.subr.mxu0 0.0
    %977 = vmatpush2.msra.mxu0 0.0
    %978 = vmatprep.subr.mxu0 0.0
    %979 = vmatpush2.msra.mxu0 0.0
    %980 = vmatprep.subr.mxu0 0.0
    %981 = vmatpush2.msra.mxu0 0.0
    %982 = vmatprep.subr.mxu0 0.0
    %983 = vmatpush2.msra.mxu0 0.0
    %984 = vmatprep.subr.mxu0 0.0
    %985 = vmatpush2.msra.mxu0 0.0
    %986 = vmatprep.subr.mxu0 0.0
    %987 = vmatpush2.msra.mxu0 0.0
    %988 = vmatprep.subr.mxu0 0.0
    %989 = vmatpush2.msra.mxu0 0.0
    %990 = vmatprep.mubr.f32.mxu0 0.0
    %v991 = vand.u32 %v597, 4294901760
    %992 = vmatmul.mubr.f32.gmra.mxu0 %v991
    %v993 = vpop.f32.mrf.mxu0
    %v994 = vadd.f32 %v914, %v993
    %v995 = vpop.f32.mrf.mxu0
    %996 = vdwg.mxu0
    %997 = vmatprep.subr.mxu0 0.0
    %998 = vmatpush1.msra.mxu0 0.0
    %999 = vmatprep.subr.mxu0 0.0
    %1000 = vmatpush1.msra.mxu0 0.0
    %1001 = vmatprep.subr.mxu0 0.0
    %1002 = vmatpush1.msra.mxu0 0.0
    %1003 = vmatprep.subr.mxu0 0.0
    %1004 = vmatpush1.msra.mxu0 0.0
    %1005 = vmatprep.subr.mxu0 0.0
    %1006 = vmatpush1.msra.mxu0 0.0
    %1007 = vmatprep.subr.mxu0 0.0
    %1008 = vmatpush1.msra.mxu0 0.0
    %1009 = vmatprep.subr.mxu0 0.0
    %1010 = vmatpush1.msra.mxu0 0.0
    %1011 = vmatprep.subr.mxu0 0.0
    %1012 = vmatpush1.msra.mxu0 0.0
    %1013 = vmatprep.subr.mxu0 0.0
    %1014 = vmatpush1.msra.mxu0 0.0
    %1015 = vmatprep.subr.mxu0 0.0
    %1016 = vmatpush1.msra.mxu0 0.0
    %1017 = vmatprep.subr.mxu0 0.0
    %1018 = vmatpush1.msra.mxu0 0.0
    %1019 = vmatprep.subr.mxu0 0.0
    %1020 = vmatpush1.msra.mxu0 0.0
    %1021 = vmatprep.subr.mxu0 0.0
    %1022 = vmatpush1.msra.mxu0 0.0
    %1023 = vmatprep.subr.mxu0 0.0
    %v1024 = vand.u32 %v587, 4294901760
    %1025 = vmatpush1.msra.mxu0 %v1024
    %1026 = vmatprep.subr.mxu0 0.0
    %v1027 = vand.u32 %v586, 4294901760
    %1028 = vmatpush1.msra.mxu0 %v1027
    %1029 = vmatprep.subr.mxu0 0.0
    %v1030 = vand.u32 %v585, 4294901760
    %1031 = vmatpush1.msra.mxu0 %v1030
    %1032 = vmatprep.subr.mxu0 0.0
    %1033 = vmatpush2.msra.mxu0 0.0
    %1034 = vmatprep.subr.mxu0 0.0
    %1035 = vmatpush2.msra.mxu0 0.0
    %1036 = vmatprep.subr.mxu0 0.0
    %1037 = vmatpush2.msra.mxu0 0.0
    %1038 = vmatprep.subr.mxu0 0.0
    %1039 = vmatpush2.msra.mxu0 0.0
    %1040 = vmatprep.subr.mxu0 0.0
    %1041 = vmatpush2.msra.mxu0 0.0
    %1042 = vmatprep.subr.mxu0 0.0
    %1043 = vmatpush2.msra.mxu0 0.0
    %1044 = vmatprep.subr.mxu0 0.0
    %1045 = vmatpush2.msra.mxu0 0.0
    %1046 = vmatprep.subr.mxu0 0.0
    %1047 = vmatpush2.msra.mxu0 0.0
    %1048 = vmatprep.subr.mxu0 0.0
    %1049 = vmatpush2.msra.mxu0 0.0
    %1050 = vmatprep.subr.mxu0 0.0
    %1051 = vmatpush2.msra.mxu0 0.0
    %1052 = vmatprep.subr.mxu0 0.0
    %1053 = vmatpush2.msra.mxu0 0.0
    %1054 = vmatprep.subr.mxu0 0.0
    %1055 = vmatpush2.msra.mxu0 0.0
    %1056 = vmatprep.subr.mxu0 0.0
    %1057 = vmatpush2.msra.mxu0 0.0
    %1058 = vmatprep.subr.mxu0 0.0
    %1059 = vmatpush2.msra.mxu0 0.0
    %1060 = vmatprep.subr.mxu0 0.0
    %1061 = vmatpush2.msra.mxu0 0.0
    %1062 = vmatprep.subr.mxu0 0.0
    %1063 = vmatpush2.msra.mxu0 0.0
    %1064 = vmatprep.mubr.f32.mxu0 0.0
    %v1065 = vand.u32 %v597, 4294901760
    %1066 = vmatmul.mubr.f32.gmra.mxu0 %v1065
    %v1067 = vpop.f32.mrf.mxu0
    %v1068 = vadd.f32 %v994, %v1067
    %v1069 = vpop.f32.mrf.mxu0
    %1070 = vdwg.mxu0
    %vm1071 = vcmask 59392
    %1072 = vst.msk [vmem:[#allocation2] sm:$0x7] %vm1071, %v1068
    // Predicated region
    $region22: #{ann_one_hid_forward.1} parent=1 // pred_check
      _
    $region23: #{ann_one_hid_forward.1} parent=1 // pred_check_branch
      %1074 = sbr.rel (0) target = $region25
    $region24: #{ann_one_hid_forward.1} parent=1 // pred_region
      %s1076 = ssub.s32 64, 64
      %1077 = vsyncadd [#allocation3], %s1076
      %s1079 = sshll.u32 [#allocation2], 4
      %s1080 = int_to_ptr.vmem [resolvable:$true] %s1079
      %1082 = dma.vmem_to_hbm [thread:$0]  %s1080, 64, %s5, [#allocation3]
    $region25: #{ann_one_hid_forward.1} parent=1 // pred_fallthru
      _
    // Predicated region
    $region26: #{ann_one_hid_forward.1} parent=1 // pred_check
      _
    $region27: #{ann_one_hid_forward.1} parent=1 // pred_check_branch
      %1084 = sbr.rel (0) target = $region29
    $region28: #{ann_one_hid_forward.1} parent=1 // pred_region
      %1085 = dma.done [#allocation3], 64
    $region29: #{ann_one_hid_forward.1} parent=1 // pred_fallthru
      _
    %1086 = vsyncpa [#allocation3], 1

</llo_original>
